<compile_context>
chip_gen: v5e
topology: v5e:2x2
jax: 0.10.0
libtpu: 0.0.40
codegen_flags: <defaults>
</compile_context>

<pallas_src>
import functools

import jax
import jax.numpy as jnp
from jax import lax
from jax.experimental import pallas as pl
from jax.experimental.pallas import tpu as pltpu


def _casrel_fused_kernel(hid_ref, aux_ref, tgt_ref, w_ref, b_ref, out_ref, *, C, NPAD):
    # hid_ref: (Bblk, L, H)    bf16 encoder hidden states
    # aux_ref: (Bblk, L, 2)    bf16 [mask | 0.5*(subj_head_map + subj_tail_map)]
    # tgt_ref: (Bblk, L, NPAD) bf16 [subj_heads | subj_tails | obj_head | obj_tail | 0-pad]
    # w_ref:   (H, NPAD)       bf16 fused [w_sh | w_st | w_oh | w_ot | 0-pad]
    # b_ref:   (1, NPAD)       f32  fused biases
    # out_ref: (1, 1, 128)     f32  partial sums (lanes 0..4)
    Bblk, L, H = hid_ref.shape

    # --- one fused MXU matmul for all four heads (bf16 in, f32 accumulate) ---
    hid2 = hid_ref[...].reshape(Bblk * L, H)
    raw = jnp.dot(hid2, w_ref[...], preferred_element_type=jnp.float32)
    raw = raw.reshape(Bblk, L, NPAD)                                    # (Bblk, L, NPAD)

    aux = aux_ref[...].astype(jnp.float32)                              # (Bblk, L, 2)
    mask = aux[:, :, 0:1]                                               # (Bblk, L, 1)
    w_sub = aux[:, :, 1:2]                                              # (Bblk, L, 1)

    # --- subject-conditioned rank-1 correction, computed in logits space ---
    #     sub @ W == sum_l w_sub[b, l] * (hidden[b, l] @ W)
    corr = jnp.sum(w_sub * raw, axis=1, keepdims=True)                  # (Bblk, 1, NPAD)
    col = lax.broadcasted_iota(jnp.int32, (1, NPAD), 1)                 # lane index
    corr = jnp.where(col >= 2, corr, 0.0)      # subject-head columns see raw hidden only
    logits = raw + b_ref[...] + corr                                    # (Bblk, L, NPAD)

    # --- masked BCE-with-logits over the whole lane-dense tile ---
    tgt = tgt_ref[...].astype(jnp.float32)                              # (Bblk, L, NPAD)
    bce = (jnp.maximum(logits, 0.0) - logits * tgt
           + jnp.log1p(jnp.exp(-jnp.abs(logits))))
    bce = bce * mask                                                    # mask broadcasts over lanes

    # per-column partial sums, then 4 masked lane reductions (one vreg each)
    per_col = jnp.sum(bce.reshape(Bblk * L, NPAD), axis=0, keepdims=True)   # (1, NPAD)
    sh_loss = jnp.sum(jnp.where(col == 0, per_col, 0.0))
    st_loss = jnp.sum(jnp.where(col == 1, per_col, 0.0))
    oh_loss = jnp.sum(jnp.where((col >= 2) & (col < 2 + C), per_col, 0.0))
    ot_loss = jnp.sum(jnp.where((col >= 2 + C) & (col < 2 + 2 * C), per_col, 0.0))
    m_sum = jnp.sum(mask.reshape(Bblk * L, 1))

    # pack the 5 scalars into lanes 0..4 of a single (1, 128) output row
    lane = lax.broadcasted_iota(jnp.int32, (1, 128), 1)
    out_ref[0] = (jnp.where(lane == 0, sh_loss, 0.0)
                  + jnp.where(lane == 1, st_loss, 0.0)
                  + jnp.where(lane == 2, oh_loss, 0.0)
                  + jnp.where(lane == 3, ot_loss, 0.0)
                  + jnp.where(lane == 4, m_sum, 0.0)).astype(jnp.float32)


def _pick_batch_block(B, max_block=8):
    for bb in range(min(B, max_block), 0, -1):
        if B % bb == 0:
            return bb
    return 1


def casrel_forward_train(params, token_ids, mask, subj_heads, subj_tails,
                         subj_head, subj_tail, obj_head, obj_tail, *, batch_block=None):
    # encode() stand-in (glue): deterministic embedding lookup; bf16 halves HBM traffic.
    hidden = params["embedding"][token_ids].astype(jnp.bfloat16)        # (B, L, H)
    B, L, H = hidden.shape
    C = params["w_oh"].shape[1]
    NPAD = 128 * pl.cdiv(2 + 2 * C, 128)

    # fused head weights [w_sh | w_st | w_oh | w_ot] padded to NPAD lanes
    w_all = jnp.zeros((H, NPAD), jnp.float32)
    w_all = w_all.at[:, 0:1].set(params["w_sh"])
    w_all = w_all.at[:, 1:2].set(params["w_st"])
    w_all = w_all.at[:, 2:2 + C].set(params["w_oh"])
    w_all = w_all.at[:, 2 + C:2 + 2 * C].set(params["w_ot"])
    w_all = w_all.astype(jnp.bfloat16)
    b_all = jnp.zeros((1, NPAD), jnp.float32)
    b_all = b_all.at[:, 0:1].set(params["b_sh"])
    b_all = b_all.at[:, 1:2].set(params["b_st"])
    b_all = b_all.at[:, 2:2 + C].set(params["b_oh"])
    b_all = b_all.at[:, 2 + C:2 + 2 * C].set(params["b_ot"])

    # lane-dense packed BCE targets (all 0/1 values, exact in bf16)
    tgt = jnp.zeros((B, L, NPAD), jnp.float32)
    tgt = tgt.at[:, :, 0].set(subj_heads)
    tgt = tgt.at[:, :, 1].set(subj_tails)
    tgt = tgt.at[:, :, 2:2 + C].set(obj_head)
    tgt = tgt.at[:, :, 2 + C:2 + 2 * C].set(obj_tail)
    tgt = tgt.astype(jnp.bfloat16)

    # packed per-token aux slab: [mask | combined subject mapping weight]
    # sub = 0.5 * (subj_head_map + subj_tail_map) applied to hidden (values 0/0.5/1: bf16 exact)
    aux = jnp.stack([mask, 0.5 * (subj_head + subj_tail)], axis=-1).astype(jnp.bfloat16)

    Bblk = batch_block if batch_block is not None else _pick_batch_block(B)
    assert B % Bblk == 0, "batch_block must divide the batch size"
    NB = B // Bblk

    kernel = functools.partial(_casrel_fused_kernel, C=C, NPAD=NPAD)
    out = pl.pallas_call(
        kernel,
        out_shape=jax.ShapeDtypeStruct((NB, 1, 128), jnp.float32),
        grid_spec=pltpu.PrefetchScalarGridSpec(
            num_scalar_prefetch=0,
            grid=(NB,),
            in_specs=[
                pl.BlockSpec((Bblk, L, H), lambda b: (b, 0, 0)),      # hidden (bf16)
                pl.BlockSpec((Bblk, L, 2), lambda b: (b, 0, 0)),      # aux    (bf16)
                pl.BlockSpec((Bblk, L, NPAD), lambda b: (b, 0, 0)),   # targets(bf16)
                pl.BlockSpec((H, NPAD), lambda b: (0, 0)),            # fused W (bf16)
                pl.BlockSpec((1, NPAD), lambda b: (0, 0)),            # fused b (f32)
            ],
            out_specs=pl.BlockSpec((1, 1, 128), lambda b: (b, 0, 0)),
        ),
        # NOTE: at production shapes (L=512, H=768) size Bblk for the generation's VMEM:
        # ~8 on v5e/v6e (raise vmem_limit_bytes), ~4 on v7x (64 MiB VMEM, 2 TCs share B axis).
        compiler_params=pltpu.CompilerParams(dimension_semantics=("parallel",)),
    )(hidden, aux, tgt, w_all, b_all)

    sums = out[:, 0, :].sum(axis=0)          # (128,) — lanes 0..4 hold the partial sums
    mask_sum = sums[4]

    subj_head_loss = sums[0] / mask_sum
    subj_tail_loss = sums[1] / mask_sum
    obj_head_loss = sums[2] / mask_sum
    obj_tail_loss = sums[3] / mask_sum
    subj_loss = subj_head_loss + subj_tail_loss
    obj_loss = obj_head_loss + obj_tail_loss
    return {
        "subj_loss": subj_loss,
        "subj_head_loss": subj_head_loss,
        "subj_tail_loss": subj_tail_loss,
        "obj_loss": obj_loss,
        "obj_head_loss": obj_head_loss,
        "obj_tail_loss": obj_tail_loss,
        "loss": subj_loss + obj_loss,
    }


def _ref_forward_train(params, token_ids, mask, subj_heads, subj_tails,
                       subj_head, subj_tail, obj_head, obj_tail):
    """Pure-JAX reference mirroring the PyTorch forward (training branch).

    Uses the same bf16 quantization of hidden / head weights as the kernel path so the
    comparison isolates the Pallas math (all reference math is f32 on the quantized values).
    """
    q = lambda x: x.astype(jnp.bfloat16).astype(jnp.float32)
    hp = jax.lax.Precision.HIGHEST

    hidden = q(params["embedding"][token_ids])                               # (B, L, H)
    sh_logits = jnp.matmul(hidden, q(params["w_sh"]), precision=hp)[..., 0] + params["b_sh"][0, 0]
    st_logits = jnp.matmul(hidden, q(params["w_st"]), precision=hp)[..., 0] + params["b_st"][0, 0]
    subj_h = jnp.einsum("bl,blh->bh", subj_head, hidden, precision=hp)
    subj_t = jnp.einsum("bl,blh->bh", subj_tail, hidden, precision=hp)
    sub = (subj_h + subj_t) * 0.5
    encoded = hidden + sub[:, None, :]
    oh_logits = jnp.matmul(encoded, q(params["w_oh"]), precision=hp) + params["b_oh"][0]
    ot_logits = jnp.matmul(encoded, q(params["w_ot"]), precision=hp) + params["b_ot"][0]

    def bce(x, y):
        return jnp.maximum(x, 0.0) - x * y + jnp.log1p(jnp.exp(-jnp.abs(x)))

    msum = mask.sum()
    shl = (bce(sh_logits, subj_heads) * mask).sum() / msum
    stl = (bce(st_logits, subj_tails) * mask).sum() / msum
    ohl = (bce(oh_logits, obj_head) * mask[:, :, None]).sum() / msum
    otl = (bce(ot_logits, obj_tail) * mask[:, :, None]).sum() / msum
    return {
        "subj_loss": shl + stl, "subj_head_loss": shl, "subj_tail_loss": stl,
        "obj_loss": ohl + otl, "obj_head_loss": ohl, "obj_tail_loss": otl,
        "loss": shl + stl + ohl + otl,
    }


if __name__ == "__main__":
    B, L, H, C, V = 4, 8, 32, 4, 50  # batch, seq, hidden, num_classes, vocab

    key = jax.random.PRNGKey(0)
    ks = jax.random.split(key, 14)

    # deterministic "parameters" (synthetic, not a checkpoint load)
    params = {
        "embedding": jax.random.normal(ks[0], (V, H), jnp.float32) * 0.1,
        "w_sh": jax.random.normal(ks[1], (H, 1), jnp.float32) * 0.1,
        "b_sh": jax.random.normal(ks[10], (1, 1), jnp.float32) * 0.1,
        "w_st": jax.random.normal(ks[2], (H, 1), jnp.float32) * 0.1,
        "b_st": jax.random.normal(ks[11], (1, 1), jnp.float32) * 0.1,
        "w_oh": jax.random.normal(ks[3], (H, C), jnp.float32) * 0.1,
        "b_oh": jax.random.normal(ks[12], (1, C), jnp.float32) * 0.1,
        "w_ot": jax.random.normal(ks[4], (H, C), jnp.float32) * 0.1,
        "b_ot": jax.random.normal(ks[13], (1, C), jnp.float32) * 0.1,
    }

    # deterministic example inputs
    token_ids = jax.random.randint(ks[5], (B, L), 0, V, jnp.int32)
    lengths = jnp.array([L, L - 3, L - 1, L - 5], jnp.int32)
    mask = (jnp.arange(L)[None, :] < lengths[:, None]).astype(jnp.float32)      # (B, L)
    subj_heads = jax.random.bernoulli(ks[6], 0.3, (B, L)).astype(jnp.float32)   # gold labels
    subj_tails = jax.random.bernoulli(ks[7], 0.3, (B, L)).astype(jnp.float32)
    subj_head = jax.nn.one_hot(jnp.array([1, 2, 0, 3]), L, dtype=jnp.float32)   # chosen subject
    subj_tail = jax.nn.one_hot(jnp.array([3, 4, 2, 5]), L, dtype=jnp.float32)
    obj_head = jax.random.bernoulli(ks[8], 0.2, (B, L, C)).astype(jnp.float32)
    obj_tail = jax.random.bernoulli(ks[9], 0.2, (B, L, C)).astype(jnp.float32)

    result = casrel_forward_train(params, token_ids, mask, subj_heads, subj_tails,
                                  subj_head, subj_tail, obj_head, obj_tail,
                                  batch_block=2)   # 2 batch elements per grid step
    result = jax.tree_util.tree_map(jax.block_until_ready, result)

    ref = _ref_forward_train(params, token_ids, mask, subj_heads, subj_tails,
                             subj_head, subj_tail, obj_head, obj_tail)
    for k in ref:
        if not jnp.allclose(result[k], ref[k], rtol=1e-3, atol=1e-4):
            raise AssertionError(f"mismatch on {k}: {result[k]} vs {ref[k]}")

    print("KERNEL_OK")
</pallas_src>

<mosaic_0001>
module attributes {stable_mosaic.version = 11 : i64} {
  func.func @_casrel_fused_kernel(%arg0: i32, %arg1: memref<2x8x32xbf16, #tpu.memory_space<vmem>>, %arg2: memref<2x8x2xbf16, #tpu.memory_space<vmem>>, %arg3: memref<2x8x128xbf16, #tpu.memory_space<vmem>>, %arg4: memref<32x128xbf16, #tpu.memory_space<vmem>>, %arg5: memref<1x128xf32, #tpu.memory_space<vmem>>, %arg6: memref<1x1x128xf32, #tpu.memory_space<vmem>>) attributes {dimension_semantics = [#tpu.dimension_semantics<parallel>], iteration_bounds = array<i64: 2>, scalar_prefetch = 0 : i64, scratch_operands = 0 : i64, tpu.core_type = #tpu.core_type<tc>, window_params = [{transform_indices = @transform_0, window_bounds = array<i64: 2, 8, 32>}, {transform_indices = @transform_1, window_bounds = array<i64: 2, 8, 2>}, {transform_indices = @transform_2, window_bounds = array<i64: 2, 8, 128>}, {pipeline_mode = #tpu.pipeline_mode<synchronous>, transform_indices = @transform_3, window_bounds = array<i64: 32, 128>}, {pipeline_mode = #tpu.pipeline_mode<synchronous>, transform_indices = @transform_4, window_bounds = array<i64: 1, 128>}, {transform_indices = @transform_5, window_bounds = array<i64: 1, 1, 128>}]} {
    %c0 = arith.constant 0 : index
    %c0_0 = arith.constant 0 : index
    %c0_1 = arith.constant 0 : index
    %0 = vector.load %arg1[%c0, %c0_0, %c0_1] : memref<2x8x32xbf16, #tpu.memory_space<vmem>>, vector<2x8x32xbf16>
    %1 = vector.shape_cast %0 : vector<2x8x32xbf16> to vector<16x32xbf16>
    %c0_2 = arith.constant 0 : index
    %c0_3 = arith.constant 0 : index
    %2 = vector.load %arg4[%c0_2, %c0_3] : memref<32x128xbf16, #tpu.memory_space<vmem>>, vector<32x128xbf16>
    %cst = arith.constant dense<0.000000e+00> : vector<16x128xf32>
    %3 = tpu.matmul %1, %2, %cst {dimension_numbers = #tpu.dot_dimension_numbers<[1], [0], [0], [1], [0, 0, 1, 1], [], []>} : vector<16x32xbf16>, vector<32x128xbf16>, vector<16x128xf32> -> vector<16x128xf32>
    %4 = vector.shape_cast %3 : vector<16x128xf32> to vector<2x8x128xf32>
    %c0_4 = arith.constant 0 : index
    %c0_5 = arith.constant 0 : index
    %c0_6 = arith.constant 0 : index
    %5 = vector.load %arg2[%c0_4, %c0_5, %c0_6] : memref<2x8x2xbf16, #tpu.memory_space<vmem>>, vector<2x8x2xbf16>
    %6 = arith.extf %5 : vector<2x8x2xbf16> to vector<2x8x2xf32>
    %7 = vector.extract_strided_slice %6 {offsets = [0, 0, 0], sizes = [2, 8, 1], strides = [1, 1, 1]} : vector<2x8x2xf32> to vector<2x8x1xf32>
    %8 = vector.extract_strided_slice %6 {offsets = [0, 0, 1], sizes = [2, 8, 1], strides = [1, 1, 1]} : vector<2x8x2xf32> to vector<2x8x1xf32>
    %9 = vector.broadcast %8 : vector<2x8x1xf32> to vector<2x8x128xf32>
    %10 = arith.mulf %9, %4 : vector<2x8x128xf32>
    %cst_7 = arith.constant dense<0.000000e+00> : vector<2x128xf32>
    %11 = vector.multi_reduction <add>, %10, %cst_7 [1] : vector<2x8x128xf32> to vector<2x128xf32>
    %12 = vector.shape_cast %11 : vector<2x128xf32> to vector<2x1x128xf32>
    %13 = tpu.iota {dimensions = array<i32: 1>} : vector<1x128xi32>
    %c2_i32 = arith.constant 2 : i32
    %14 = vector.broadcast %c2_i32 : i32 to vector<1x128xi32>
    %15 = arith.cmpi sge, %13, %14 : vector<1x128xi32>
    %cst_8 = arith.constant 0.000000e+00 : f32
    %16 = vector.shape_cast %15 : vector<1x128xi1> to vector<1x1x128xi1>
    %17 = vector.broadcast %16 : vector<1x1x128xi1> to vector<2x1x128xi1>
    %18 = vector.broadcast %cst_8 : f32 to vector<2x1x128xf32>
    %19 = arith.select %17, %12, %18 : vector<2x1x128xi1>, vector<2x1x128xf32>
    %c0_9 = arith.constant 0 : index
    %c0_10 = arith.constant 0 : index
    %20 = vector.load %arg5[%c0_9, %c0_10] : memref<1x128xf32, #tpu.memory_space<vmem>>, vector<1x128xf32>
    %21 = vector.shape_cast %20 : vector<1x128xf32> to vector<1x1x128xf32>
    %22 = vector.broadcast %21 : vector<1x1x128xf32> to vector<2x8x128xf32>
    %23 = arith.addf %4, %22 : vector<2x8x128xf32>
    %24 = vector.broadcast %19 : vector<2x1x128xf32> to vector<2x8x128xf32>
    %25 = arith.addf %23, %24 : vector<2x8x128xf32>
    %c0_11 = arith.constant 0 : index
    %c0_12 = arith.constant 0 : index
    %c0_13 = arith.constant 0 : index
    %26 = vector.load %arg3[%c0_11, %c0_12, %c0_13] : memref<2x8x128xbf16, #tpu.memory_space<vmem>>, vector<2x8x128xbf16>
    %27 = arith.extf %26 : vector<2x8x128xbf16> to vector<2x8x128xf32>
    %cst_14 = arith.constant 0.000000e+00 : f32
    %28 = vector.broadcast %cst_14 : f32 to vector<2x8x128xf32>
    %29 = arith.maximumf %25, %28 : vector<2x8x128xf32>
    %30 = arith.mulf %25, %27 : vector<2x8x128xf32>
    %31 = arith.subf %29, %30 : vector<2x8x128xf32>
    %32 = math.absf %25 : vector<2x8x128xf32>
    %cst_15 = arith.constant 0.000000e+00 : f32
    %33 = vector.broadcast %cst_15 : f32 to vector<2x8x128xf32>
    %34 = arith.subf %33, %32 : vector<2x8x128xf32>
    %35 = math.exp %34 : vector<2x8x128xf32>
    %36 = math.log1p %35 : vector<2x8x128xf32>
    %37 = arith.addf %31, %36 : vector<2x8x128xf32>
    %38 = vector.broadcast %7 : vector<2x8x1xf32> to vector<2x8x128xf32>
    %39 = arith.mulf %37, %38 : vector<2x8x128xf32>
    %40 = vector.shape_cast %39 : vector<2x8x128xf32> to vector<16x128xf32>
    %cst_16 = arith.constant dense<0.000000e+00> : vector<128xf32>
    %41 = vector.multi_reduction <add>, %40, %cst_16 [0] : vector<16x128xf32> to vector<128xf32>
    %42 = vector.shape_cast %41 : vector<128xf32> to vector<1x128xf32>
    %c0_i32 = arith.constant 0 : i32
    %43 = vector.broadcast %c0_i32 : i32 to vector<1x128xi32>
    %44 = arith.cmpi eq, %13, %43 : vector<1x128xi32>
    %cst_17 = arith.constant 0.000000e+00 : f32
    %45 = vector.broadcast %cst_17 : f32 to vector<1x128xf32>
    %46 = arith.select %44, %42, %45 : vector<1x128xi1>, vector<1x128xf32>
    %47 = vector.shape_cast %46 : vector<1x128xf32> to vector<1x1x128xf32>
    %cst_18 = arith.constant dense<0.000000e+00> : vector<1xf32>
    %48 = vector.multi_reduction <add>, %47, %cst_18 [1, 2] : vector<1x1x128xf32> to vector<1xf32>
    %49 = vector.shape_cast %48 : vector<1xf32> to vector<1x1x1xf32>
    %50 = vector.extract %49[0, 0, 0] : f32 from vector<1x1x1xf32>
    %c1_i32 = arith.constant 1 : i32
    %51 = vector.broadcast %c1_i32 : i32 to vector<1x128xi32>
    %52 = arith.cmpi eq, %13, %51 : vector<1x128xi32>
    %cst_19 = arith.constant 0.000000e+00 : f32
    %53 = vector.broadcast %cst_19 : f32 to vector<1x128xf32>
    %54 = arith.select %52, %42, %53 : vector<1x128xi1>, vector<1x128xf32>
    %55 = vector.shape_cast %54 : vector<1x128xf32> to vector<1x1x128xf32>
    %cst_20 = arith.constant dense<0.000000e+00> : vector<1xf32>
    %56 = vector.multi_reduction <add>, %55, %cst_20 [1, 2] : vector<1x1x128xf32> to vector<1xf32>
    %57 = vector.shape_cast %56 : vector<1xf32> to vector<1x1x1xf32>
    %58 = vector.extract %57[0, 0, 0] : f32 from vector<1x1x1xf32>
    %c2_i32_21 = arith.constant 2 : i32
    %59 = vector.broadcast %c2_i32_21 : i32 to vector<1x128xi32>
    %60 = arith.cmpi sge, %13, %59 : vector<1x128xi32>
    %c6_i32 = arith.constant 6 : i32
    %61 = vector.broadcast %c6_i32 : i32 to vector<1x128xi32>
    %62 = arith.cmpi slt, %13, %61 : vector<1x128xi32>
    %63 = arith.andi %60, %62 : vector<1x128xi1>
    %cst_22 = arith.constant 0.000000e+00 : f32
    %64 = vector.broadcast %cst_22 : f32 to vector<1x128xf32>
    %65 = arith.select %63, %42, %64 : vector<1x128xi1>, vector<1x128xf32>
    %66 = vector.shape_cast %65 : vector<1x128xf32> to vector<1x1x128xf32>
    %cst_23 = arith.constant dense<0.000000e+00> : vector<1xf32>
    %67 = vector.multi_reduction <add>, %66, %cst_23 [1, 2] : vector<1x1x128xf32> to vector<1xf32>
    %68 = vector.shape_cast %67 : vector<1xf32> to vector<1x1x1xf32>
    %69 = vector.extract %68[0, 0, 0] : f32 from vector<1x1x1xf32>
    %c6_i32_24 = arith.constant 6 : i32
    %70 = vector.broadcast %c6_i32_24 : i32 to vector<1x128xi32>
    %71 = arith.cmpi sge, %13, %70 : vector<1x128xi32>
    %c10_i32 = arith.constant 10 : i32
    %72 = vector.broadcast %c10_i32 : i32 to vector<1x128xi32>
    %73 = arith.cmpi slt, %13, %72 : vector<1x128xi32>
    %74 = arith.andi %71, %73 : vector<1x128xi1>
    %cst_25 = arith.constant 0.000000e+00 : f32
    %75 = vector.broadcast %cst_25 : f32 to vector<1x128xf32>
    %76 = arith.select %74, %42, %75 : vector<1x128xi1>, vector<1x128xf32>
    %77 = vector.shape_cast %76 : vector<1x128xf32> to vector<1x1x128xf32>
    %cst_26 = arith.constant dense<0.000000e+00> : vector<1xf32>
    %78 = vector.multi_reduction <add>, %77, %cst_26 [1, 2] : vector<1x1x128xf32> to vector<1xf32>
    %79 = vector.shape_cast %78 : vector<1xf32> to vector<1x1x1xf32>
    %80 = vector.extract %79[0, 0, 0] : f32 from vector<1x1x1xf32>
    %81 = vector.shape_cast %7 : vector<2x8x1xf32> to vector<16x1xf32>
    %82 = vector.shape_cast %81 : vector<16x1xf32> to vector<1x16x1xf32>
    %cst_27 = arith.constant dense<0.000000e+00> : vector<1xf32>
    %83 = vector.multi_reduction <add>, %82, %cst_27 [1, 2] : vector<1x16x1xf32> to vector<1xf32>
    %84 = vector.shape_cast %83 : vector<1xf32> to vector<1x1x1xf32>
    %85 = vector.extract %84[0, 0, 0] : f32 from vector<1x1x1xf32>
    %86 = tpu.iota {dimensions = array<i32: 1>} : vector<1x128xi32>
    %c0_i32_28 = arith.constant 0 : i32
    %87 = vector.broadcast %c0_i32_28 : i32 to vector<1x128xi32>
    %88 = arith.cmpi eq, %86, %87 : vector<1x128xi32>
    %cst_29 = arith.constant 0.000000e+00 : f32
    %89 = vector.broadcast %50 : f32 to vector<1x128xf32>
    %90 = vector.broadcast %cst_29 : f32 to vector<1x128xf32>
    %91 = arith.select %88, %89, %90 : vector<1x128xi1>, vector<1x128xf32>
    %c1_i32_30 = arith.constant 1 : i32
    %92 = vector.broadcast %c1_i32_30 : i32 to vector<1x128xi32>
    %93 = arith.cmpi eq, %86, %92 : vector<1x128xi32>
    %cst_31 = arith.constant 0.000000e+00 : f32
    %94 = vector.broadcast %58 : f32 to vector<1x128xf32>
    %95 = vector.broadcast %cst_31 : f32 to vector<1x128xf32>
    %96 = arith.select %93, %94, %95 : vector<1x128xi1>, vector<1x128xf32>
    %97 = arith.addf %91, %96 : vector<1x128xf32>
    %c2_i32_32 = arith.constant 2 : i32
    %98 = vector.broadcast %c2_i32_32 : i32 to vector<1x128xi32>
    %99 = arith.cmpi eq, %86, %98 : vector<1x128xi32>
    %cst_33 = arith.constant 0.000000e+00 : f32
    %100 = vector.broadcast %69 : f32 to vector<1x128xf32>
    %101 = vector.broadcast %cst_33 : f32 to vector<1x128xf32>
    %102 = arith.select %99, %100, %101 : vector<1x128xi1>, vector<1x128xf32>
    %103 = arith.addf %97, %102 : vector<1x128xf32>
    %c3_i32 = arith.constant 3 : i32
    %104 = vector.broadcast %c3_i32 : i32 to vector<1x128xi32>
    %105 = arith.cmpi eq, %86, %104 : vector<1x128xi32>
    %cst_34 = arith.constant 0.000000e+00 : f32
    %106 = vector.broadcast %80 : f32 to vector<1x128xf32>
    %107 = vector.broadcast %cst_34 : f32 to vector<1x128xf32>
    %108 = arith.select %105, %106, %107 : vector<1x128xi1>, vector<1x128xf32>
    %109 = arith.addf %103, %108 : vector<1x128xf32>
    %c4_i32 = arith.constant 4 : i32
    %110 = vector.broadcast %c4_i32 : i32 to vector<1x128xi32>
    %111 = arith.cmpi eq, %86, %110 : vector<1x128xi32>
    %cst_35 = arith.constant 0.000000e+00 : f32
    %112 = vector.broadcast %85 : f32 to vector<1x128xf32>
    %113 = vector.broadcast %cst_35 : f32 to vector<1x128xf32>
    %114 = arith.select %111, %112, %113 : vector<1x128xi1>, vector<1x128xf32>
    %115 = arith.addf %109, %114 : vector<1x128xf32>
    %c0_36 = arith.constant 0 : index
    %c0_37 = arith.constant 0 : index
    %c0_38 = arith.constant 0 : index
    %116 = vector.load %arg6[%c0_36, %c0_37, %c0_38] : memref<1x1x128xf32, #tpu.memory_space<vmem>>, vector<1x1x128xf32>
    %117 = vector.shape_cast %116 : vector<1x1x128xf32> to vector<1x128xf32>
    %118 = vector.shape_cast %115 : vector<1x128xf32> to vector<1x1x128xf32>
    tpu.vector_store %arg6[%c0_36, %c0_37, %c0_38], %118 {strides = array<i32>} : memref<1x1x128xf32, #tpu.memory_space<vmem>>, vector<1x1x128xf32>,
    return
  }
  func.func @transform_0(%arg0: i32) -> (i32, i32, i32) {
    %c0_i32 = arith.constant 0 : i32
    %c0_i32_0 = arith.constant 0 : i32
    %c0_i32_1 = arith.constant 0 : i32
    return %arg0, %c0_i32, %c0_i32_0 : i32, i32, i32
  }
  func.func @transform_1(%arg0: i32) -> (i32, i32, i32) {
    %c0_i32 = arith.constant 0 : i32
    %c0_i32_0 = arith.constant 0 : i32
    %c0_i32_1 = arith.constant 0 : i32
    return %arg0, %c0_i32, %c0_i32_0 : i32, i32, i32
  }
  func.func @transform_2(%arg0: i32) -> (i32, i32, i32) {
    %c0_i32 = arith.constant 0 : i32
    %c0_i32_0 = arith.constant 0 : i32
    %c0_i32_1 = arith.constant 0 : i32
    return %arg0, %c0_i32, %c0_i32_0 : i32, i32, i32
  }
  func.func @transform_3(%arg0: i32) -> (i32, i32) {
    %c0_i32 = arith.constant 0 : i32
    %c0_i32_0 = arith.constant 0 : i32
    %c0_i32_1 = arith.constant 0 : i32
    return %c0_i32, %c0_i32_0 : i32, i32
  }
  func.func @transform_4(%arg0: i32) -> (i32, i32) {
    %c0_i32 = arith.constant 0 : i32
    %c0_i32_0 = arith.constant 0 : i32
    %c0_i32_1 = arith.constant 0 : i32
    return %c0_i32, %c0_i32_0 : i32, i32
  }
  func.func @transform_5(%arg0: i32) -> (i32, i32, i32) {
    %c0_i32 = arith.constant 0 : i32
    %c0_i32_0 = arith.constant 0 : i32
    %c0_i32_1 = arith.constant 0 : i32
    return %arg0, %c0_i32, %c0_i32_0 : i32, i32, i32
  }
}

</mosaic_0001>

<llo_original>
// kernel: tpu_custom_call.1
$region0: #{tpu_custom_call.1}
  #allocation0 [shape = 'u32[]', space=smem, size = 0x4, offset = 0x4, fixed_abs, tag = 'smem constant byte address 0x4 - core index']
  #allocation1 [shape = 'u32[72,128]{1,0:T(1,128)}', space=vmem, size = 0x9000, scoped, tag = 'internal scratch']
  %s0 = inlined_call_operand.vmem [shape: bf16[4,8,32], index: 0, kind: input, shape index: {}]
  %s1 = inlined_call_operand.vmem [shape: bf16[4,8,2], index: 1, kind: input, shape index: {}]
  %s2 = inlined_call_operand.hbm [shape: bf16[4,8,128], index: 2, kind: input, shape index: {}]
  %s3 = inlined_call_operand.hbm [shape: bf16[32,128], index: 3, kind: input, shape index: {}]
  %s4 = inlined_call_operand.vmem [shape: f32[1,128], index: 4, kind: input, shape index: {}]
  %s5 = inlined_call_operand.hbm [shape: f32[2,1,128], index: 5, kind: output, shape index: {}]
  %s6 = sld [smem:[#allocation0]]
  $region61: #{tpu_custom_call.1} parent=0
    _
  %s8 = ssub.s32 1, %s6
  %s9 = scalar_select 0, %s8, %s6
  $region1: #{tpu_custom_call.1} parent=0
    #allocation2 [shape = 'u8[8192]{0}', space=vmem, size = 0x2000, scoped, tag = 'input window, operand 2']
    #allocation3 [shape = 's32[2]{0}', space=sflag, size = 0x8, scoped, tag = 'scoped memory for tpu_custom_call.1']
    #allocation4 [shape = 's32[2]{0}', space=sflag, size = 0x8, scoped, tag = 'scoped memory for tpu_custom_call.1']
    #allocation5 [shape = 'u8[8192]{0}', space=vmem, size = 0x2000, scoped, tag = 'input window, operand 3, single buffered']
    #allocation6 [shape = 's32[1]{0}', space=sflag, size = 0x4, scoped, tag = 'scoped memory for tpu_custom_call.1']
    #allocation7 [shape = 'u8[1024]{0}', space=vmem, size = 0x400, scoped, tag = 'output window, operand 0']
    %10 = vsyncpa [#allocation3], 0
    %s11 = scalar_lea.sflag [#allocation3], 1
    %12 = vsyncpa %s11, 0
    %13 = vsyncpa [#allocation6], 0
    %14 = vsyncpa [#allocation4], 0
    %s15 = scalar_lea.sflag [#allocation4], 1
    %16 = vsyncpa %s15, 0
    loop: start=0, step=1, limit=4
    $region2: #{tpu_custom_call.1} parent=1 // loop_pre_header
      _
    $region3: #{tpu_custom_call.1} parent=1 // loop_header
      %s18 = sphi 0, %s22
      %p19 = scmp.ge.s32.totalorder %s18, 4
      %s28 = sphi 0, %s30
      %s31 = sphi 0, %s28
      %s32 = sphi 0, %s31
      %s48 = sphi 0, %s32
      %s54 = sphi 0, %s56
      %s57 = sphi 0, %s54
      %s58 = sphi 0, %s57
      %s74 = sphi 0, %s58
      %s80 = sphi 0, %s82
      %s83 = sphi 0, %s80
      %s84 = sphi 0, %s83
      %s100 = sphi 0, %s84
      %s104 = sphi 0, %s104
      %s106 = sphi 0, %s104
      %s107 = sphi 0, %s106
      %s121 = sphi 0, %s107
      %s125 = sphi 0, %s125
      %s127 = sphi 0, %s125
      %s128 = sphi 0, %s127
      %s142 = sphi 0, %s128
      %s148 = sphi 0, %s150
      %s151 = sphi 0, %s148
      %s152 = sphi 0, %s151
      %s168 = sphi 0, %s152
    $region4: #{tpu_custom_call.1} parent=1 // loop_header_branch
      %21 = sbr.rel (%p19) target = $region8
    $region5: #{tpu_custom_call.1} parent=1 // loop_body
      %s23 = ssub.s32 %s18, 1
      %s24 = ssub.s32 %s18, 2
      %s25 = sadd.s32 %s18, 1
      %s26 = ssub.s32 %s18, %s25
      %p27 = scmp.eq.s32.totalorder %s26, 0
      %s29 = sadd.s32 %s28, 1
      %s30 = scalar_select %p27, %s28, %s29
      %p33 = pneg %p27
      %p34 = scmp.eq.s32.totalorder %s18, 1
      %p35 = por %p33, %p34
      %p36 = scmp.ne.s32.totalorder %s28, %s31
      %p37 = scmp.eq.s32.totalorder %s18, 0
      %p38 = por %p36, %p37
      %p39 = scmp.ne.s32.totalorder %s28, %s31
      %p40 = scmp.eq.s32.totalorder %s23, 1
      %p41 = por %p39, %p40
      %p42 = scmp.ne.s32.totalorder %s31, %s32
      %p43 = scmp.eq.s32.totalorder %s23, 0
      %p44 = por %p42, %p43
      %p45 = scmp.ne.s32.totalorder %s31, %s32
      %p46 = scmp.eq.s32.totalorder %s24, 1
      %p47 = por %p45, %p46
      %p49 = scmp.ne.s32.totalorder %s32, %s48
      %p50 = scmp.eq.s32.totalorder %s24, 0
      %p51 = por %p49, %p50
      %s52 = ssub.s32 %s18, %s25
      %p53 = scmp.eq.s32.totalorder %s52, 0
      %s55 = sadd.s32 %s54, 1
      %s56 = scalar_select %p53, %s54, %s55
      %p59 = pneg %p53
      %p60 = scmp.eq.s32.totalorder %s18, 1
      %p61 = por %p59, %p60
      %p62 = scmp.ne.s32.totalorder %s54, %s57
      %p63 = scmp.eq.s32.totalorder %s18, 0
      %p64 = por %p62, %p63
      %p65 = scmp.ne.s32.totalorder %s54, %s57
      %p66 = scmp.eq.s32.totalorder %s23, 1
      %p67 = por %p65, %p66
      %p68 = scmp.ne.s32.totalorder %s57, %s58
      %p69 = scmp.eq.s32.totalorder %s23, 0
      %p70 = por %p68, %p69
      %p71 = scmp.ne.s32.totalorder %s57, %s58
      %p72 = scmp.eq.s32.totalorder %s24, 1
      %p73 = por %p71, %p72
      %p75 = scmp.ne.s32.totalorder %s58, %s74
      %p76 = scmp.eq.s32.totalorder %s24, 0
      %p77 = por %p75, %p76
      %s78 = ssub.s32 %s18, %s25
      %p79 = scmp.eq.s32.totalorder %s78, 0
      %s81 = sadd.s32 %s80, 1
      %s82 = scalar_select %p79, %s80, %s81
      %p85 = pneg %p79
      %p86 = scmp.eq.s32.totalorder %s18, 1
      %p87 = por %p85, %p86
      %p88 = scmp.ne.s32.totalorder %s80, %s83
      %p89 = scmp.eq.s32.totalorder %s18, 0
      %p90 = por %p88, %p89
      %p91 = scmp.ne.s32.totalorder %s80, %s83
      %p92 = scmp.eq.s32.totalorder %s23, 1
      %p93 = por %p91, %p92
      %p94 = scmp.ne.s32.totalorder %s83, %s84
      %p95 = scmp.eq.s32.totalorder %s23, 0
      %p96 = por %p94, %p95
      %p97 = scmp.ne.s32.totalorder %s83, %s84
      %p98 = scmp.eq.s32.totalorder %s24, 1
      %p99 = por %p97, %p98
      %p101 = scmp.ne.s32.totalorder %s84, %s100
      %p102 = scmp.eq.s32.totalorder %s24, 0
      %p103 = por %p101, %p102
      %s105 = sadd.s32 %s104, 1
      %p108 = scmp.eq.s32.totalorder %s18, 1
      %p109 = scmp.ne.s32.totalorder %s104, %s106
      %p110 = scmp.eq.s32.totalorder %s18, 0
      %p111 = por %p109, %p110
      %p112 = scmp.ne.s32.totalorder %s104, %s106
      %p113 = scmp.eq.s32.totalorder %s23, 1
      %p114 = por %p112, %p113
      %p115 = scmp.ne.s32.totalorder %s106, %s107
      %p116 = scmp.eq.s32.totalorder %s23, 0
      %p117 = por %p115, %p116
      %p118 = scmp.ne.s32.totalorder %s106, %s107
      %p119 = scmp.eq.s32.totalorder %s24, 1
      %p120 = por %p118, %p119
      %p122 = scmp.ne.s32.totalorder %s107, %s121
      %p123 = scmp.eq.s32.totalorder %s24, 0
      %p124 = por %p122, %p123
      %s126 = sadd.s32 %s125, 1
      %p129 = scmp.eq.s32.totalorder %s18, 1
      %p130 = scmp.ne.s32.totalorder %s125, %s127
      %p131 = scmp.eq.s32.totalorder %s18, 0
      %p132 = por %p130, %p131
      %p133 = scmp.ne.s32.totalorder %s125, %s127
      %p134 = scmp.eq.s32.totalorder %s23, 1
      %p135 = por %p133, %p134
      %p136 = scmp.ne.s32.totalorder %s127, %s128
      %p137 = scmp.eq.s32.totalorder %s23, 0
      %p138 = por %p136, %p137
      %p139 = scmp.ne.s32.totalorder %s127, %s128
      %p140 = scmp.eq.s32.totalorder %s24, 1
      %p141 = por %p139, %p140
      %p143 = scmp.ne.s32.totalorder %s128, %s142
      %p144 = scmp.eq.s32.totalorder %s24, 0
      %p145 = por %p143, %p144
      %s146 = ssub.s32 %s18, %s25
      %p147 = scmp.eq.s32.totalorder %s146, 0
      %s149 = sadd.s32 %s148, 1
      %s150 = scalar_select %p147, %s148, %s149
      %p153 = pneg %p147
      %p154 = scmp.eq.s32.totalorder %s18, 1
      %p155 = por %p153, %p154
      %p156 = scmp.ne.s32.totalorder %s148, %s151
      %p157 = scmp.eq.s32.totalorder %s18, 0
      %p158 = por %p156, %p157
      %p159 = scmp.ne.s32.totalorder %s148, %s151
      %p160 = scmp.eq.s32.totalorder %s23, 1
      %p161 = por %p159, %p160
      %p162 = scmp.ne.s32.totalorder %s151, %s152
      %p163 = scmp.eq.s32.totalorder %s23, 0
      %p164 = por %p162, %p163
      %p165 = scmp.ne.s32.totalorder %s151, %s152
      %p166 = scmp.eq.s32.totalorder %s24, 1
      %p167 = por %p165, %p166
      %p169 = scmp.ne.s32.totalorder %s152, %s168
      %p170 = scmp.eq.s32.totalorder %s24, 0
      %p171 = por %p169, %p170
      %p172 = scmp.le.s32.totalorder 1, %s18
      %p173 = scmp.lt.s32.totalorder %s18, 3
      %p174 = pnand %p172, %p173
      %p175 = pneg %p174
      // Predicated region
      $region9: #{tpu_custom_call.1} parent=5 // pred_check
        _
      $region10: #{tpu_custom_call.1} parent=5 // pred_check_branch
        %177 = sbr.rel (%p174) target = $region12
      $region11: #{tpu_custom_call.1} parent=5 // pred_region
        %s178 = ssub.s32 %s18, 1
        // Predicated region
        $region13: #{tpu_custom_call.1} parent=11 // pred_check
          %p179 = pneg %p117
        $region14: #{tpu_custom_call.1} parent=11 // pred_check_branch
          %181 = sbr.rel (%p179) target = $region16
        $region15: #{tpu_custom_call.1} parent=11 // pred_region
          %183 = vsyncadd [#allocation6], 0
          %s184 = sshll.u32 %s3, 4
          %s185 = int_to_ptr.hbm [resolvable:$true] %s184
          %s186 = sshll.u32 [#allocation5], 4
          %s187 = int_to_ptr.vmem [resolvable:$true] %s186
          %192 = dma.hbm_to_vmem [thread:$0]  %s185, 256, %s187, [#allocation6], 64, 64, 4
        $region16: #{tpu_custom_call.1} parent=11 // pred_fallthru
          _
        // Predicated region
        $region17: #{tpu_custom_call.1} parent=11 // pred_check
          %p193 = pneg %p138
        $region18: #{tpu_custom_call.1} parent=11 // pred_check_branch
          %195 = sbr.rel (%p193) target = $region20
        $region19: #{tpu_custom_call.1} parent=11 // pred_region
          _
        $region20: #{tpu_custom_call.1} parent=11 // pred_fallthru
          _
      $region12: #{tpu_custom_call.1} parent=5 // pred_fallthru
        _
      %p196 = scmp.lt.s32.totalorder %s18, 2
      // Predicated region
      $region21: #{tpu_custom_call.1} parent=5 // pred_check
        %p197 = pneg %p196
      $region22: #{tpu_custom_call.1} parent=5 // pred_check_branch
        %199 = sbr.rel (%p197) target = $region24
      $region23: #{tpu_custom_call.1} parent=5 // pred_region
        // Predicated region
        $region25: #{tpu_custom_call.1} parent=23 // pred_check
          %p200 = pneg %p38
        $region26: #{tpu_custom_call.1} parent=23 // pred_check_branch
          %202 = sbr.rel (%p200) target = $region28
        $region27: #{tpu_custom_call.1} parent=23 // pred_region
          %s203 = smul.u32 2, %s18
          %p204 = scmp.lt.s32.totalorder %s203, 3
          %s205 = scalar_select %p204, %s203, 3
          %s206 = smul.addr %s205, 4
          %s207 = scalar_lea.vmem %s0, %s206
          %s208 = smul.u32 2, %s18
        $region28: #{tpu_custom_call.1} parent=23 // pred_fallthru
          _
        // Predicated region
        $region29: #{tpu_custom_call.1} parent=23 // pred_check
          %p209 = pneg %p64
        $region30: #{tpu_custom_call.1} parent=23 // pred_check_branch
          %211 = sbr.rel (%p209) target = $region32
        $region31: #{tpu_custom_call.1} parent=23 // pred_region
          %s212 = smul.u32 2, %s18
          %p213 = scmp.lt.s32.totalorder %s212, 3
          %s214 = scalar_select %p213, %s212, 3
          %s215 = smul.addr %s214, 4
          %s216 = scalar_lea.vmem %s1, %s215
          %s217 = smul.u32 2, %s18
        $region32: #{tpu_custom_call.1} parent=23 // pred_fallthru
          _
        // Predicated region
        $region33: #{tpu_custom_call.1} parent=23 // pred_check
          %p218 = pneg %p90
        $region34: #{tpu_custom_call.1} parent=23 // pred_check_branch
          %220 = sbr.rel (%p218) target = $region36
        $region35: #{tpu_custom_call.1} parent=23 // pred_region
          %s221 = sand.u32 %s80, 1
          %s222 = scalar_lea.sflag [#allocation3], %s221
          %s223 = sand.u32 %s80, 1
          %s224 = smul.addr %s223, 8
          %s225 = scalar_lea.vmem [#allocation2], %s224
          %s226 = smul.u32 2, %s18
          %228 = vsyncadd %s222, 0
          %s229 = smul.addr %s226, 4
          %s230 = scalar_lea.hbm %s2, %s229
          %s231 = sshll.u32 %s230, 4
          %s232 = int_to_ptr.hbm [resolvable:$true] %s231
          %s233 = sshll.u32 %s225, 4
          %s234 = int_to_ptr.vmem [resolvable:$true] %s233
          %239 = dma.hbm_to_vmem [thread:$0]  %s232, 128, %s234, %s222, 64, 64, 4
        $region36: #{tpu_custom_call.1} parent=23 // pred_fallthru
          _
      $region24: #{tpu_custom_call.1} parent=5 // pred_fallthru
        _
      %p240 = scmp.le.s32.totalorder 1, %s18
      %p241 = scmp.lt.s32.totalorder %s18, 3
      %p242 = pnand %p240, %p241
      %p243 = pneg %p242
      // Predicated region
      $region37: #{tpu_custom_call.1} parent=5 // pred_check
        _
      $region38: #{tpu_custom_call.1} parent=5 // pred_check_branch
        %245 = sbr.rel (%p242) target = $region40
      $region39: #{tpu_custom_call.1} parent=5 // pred_region
        %s246 = ssub.s32 %s18, 1
        %s247 = sand.u32 %s83, 1
        %s248 = scalar_lea.sflag [#allocation3], %s247
        %s249 = sand.u32 %s83, 1
        %s250 = smul.addr %s249, 8
        %s251 = scalar_lea.vmem [#allocation2], %s250
        // Predicated region
        $region41: #{tpu_custom_call.1} parent=39 // pred_check
          %p252 = pneg %p96
        $region42: #{tpu_custom_call.1} parent=39 // pred_check_branch
          %254 = sbr.rel (%p252) target = $region44
        $region43: #{tpu_custom_call.1} parent=39 // pred_region
          %256 = dma.done %s248, 128
        $region44: #{tpu_custom_call.1} parent=39 // pred_fallthru
          _
        // Predicated region
        $region45: #{tpu_custom_call.1} parent=39 // pred_check
          %p257 = pneg %p117
        $region46: #{tpu_custom_call.1} parent=39 // pred_check_branch
          %259 = sbr.rel (%p257) target = $region48
        $region47: #{tpu_custom_call.1} parent=39 // pred_region
          %261 = dma.done [#allocation6], 256
        $region48: #{tpu_custom_call.1} parent=39 // pred_fallthru
          _
        %s262 = smul.u32 2, %s23
        %p263 = scmp.lt.s32.totalorder %s262, 3
        %s264 = scalar_select %p263, %s262, 3
        %s265 = smul.addr %s264, 4
        %s266 = scalar_lea.vmem %s0, %s265
        %p267 = pneg %p44
        %p268 = pneg %p41
        %s269 = smul.u32 2, %s23
        %p270 = scmp.lt.s32.totalorder %s269, 3
        %s271 = scalar_select %p270, %s269, 3
        %s272 = smul.addr %s271, 4
        %s273 = scalar_lea.vmem %s1, %s272
        %p274 = pneg %p70
        %p275 = pneg %p67
        %s276 = sand.u32 %s83, 1
        %s277 = scalar_lea.sflag [#allocation3], %s276
        %s278 = sand.u32 %s83, 1
        %s279 = smul.addr %s278, 8
        %s280 = scalar_lea.vmem [#allocation2], %s279
        %p281 = pneg %p96
        %p282 = pneg %p93
        %p283 = pneg %p117
        %p284 = pneg %p114
        %p285 = pneg %p138
        %p286 = pneg %p135
        %p287 = pneg %p164
        %p288 = pneg %p161
        %s289 = sand.u32 %s151, 1
        %s290 = scalar_lea.sflag [#allocation4], %s289
        %s291 = sand.u32 %s151, 1
        %s292 = scalar_lea.vmem [#allocation7], %s291
        %s293 = smul.u32 2, %s23
        %p294 = scmp.lt.s32.totalorder %s293, 3
        %s295 = scalar_select %p294, %s293, 3
        %s296 = smul.addr %s295, 4
        %s297 = scalar_lea.vmem %s0, %s296
        %s298 = smul.u32 2, %s23
        %s299 = smul.u32 2, %s23
        %p300 = scmp.lt.s32.totalorder %s299, 3
        %s301 = scalar_select %p300, %s299, 3
        %s302 = smul.addr %s301, 4
        %s303 = scalar_lea.vmem %s1, %s302
        %s304 = smul.u32 2, %s23
        %s305 = smul.u32 2, %s23
        %v307 = vld [vmem:[%s297] sm:$0xf]
        %v308 = vld [vmem:[%s297 + $0x4] sm:$0xf]
        %v309 = vld [vmem:[#allocation5] sm:$0xf]
        %v310 = vld [vmem:[#allocation5 + $0x4] sm:$0xf]
        %v311 = vld [vmem:[#allocation5 + $0x8] sm:$0xf]
        %v312 = vld [vmem:[#allocation5 + $0xc] sm:$0xf]
        %v315 = vunpack.c.l.b16 %v307
        %v316 = vunpack.c.l.b16 %v308
        %v317 = vpack.c.b16 %v316, %v315
        %v322 = vunpack.c.l.b16 %v309
        %v323 = vunpack.c.l.b16 %v310
        %v324 = vunpack.c.l.b16 %v311
        %v325 = vunpack.c.l.b16 %v312
        %v326 = vpack.c.b16 %v323, %v322
        %v327 = vpack.c.b16 %v325, %v324
        %vm330 = vcmask 261120
        %v332 = vsel %vm330, %v317, 0
        %334 = vmatpush.bf16.msra.mxu0 0
        %335 = vmatpush.bf16.msra.mxu0 0
        %336 = vmatpush.bf16.msra.mxu0 0
        %337 = vmatpush.bf16.msra.mxu0 0
        %338 = vmatpush.bf16.msra.mxu0 0
        %339 = vmatpush.bf16.msra.mxu0 0
        %340 = vmatpush.bf16.msra.mxu0 %v327
        %341 = vmatpush.bf16.msra.mxu0 %v326
        %342 = vmatmul.bf16.gmra.mxu0 %v332
        %v343 = vpop.f32.mrf.mxu0
        %v344 = vadd.f32 0.0, %v343
        %v345 = vpop.f32.mrf.mxu0
        %v346 = vadd.f32 0.0, %v345
        %347 = vdwg.mxu0
        %v348 = vld [vmem:[%s303] sm:$0xf]
        %v349 = vld [vmem:[%s303 + $0x4] sm:$0xf]
        %v350 = vunpack.c.l.bf16 %v348
        %v351 = vunpack.c.l.bf16 %v349
        %353 = vset.pattern.permute.xlu0 1
        %354 = vperm.xlu0 %353, %v350
        %v355 = vpop.permute.xlu0 %354
        %358 = vset.pattern.permute.xlu0 1
        %359 = vperm.xlu0 %358, %v351
        %v360 = vpop.permute.xlu0 %359
        %v362 = vmul.f32 %v355, %v344
        %v363 = vmul.f32 %v360, %v346
        %v364 = vrot.slane %v362, 4
        %v365 = vadd.f32 %v362, %v364
        %v366 = vrot.slane %v365, 2
        %v367 = vadd.f32 %v365, %v366
        %v368 = vrot.slane %v367, 1
        %v369 = vadd.f32 %v367, %v368
        %v370 = vrot.slane %v363, 4
        %v371 = vadd.f32 %v363, %v370
        %v372 = vrot.slane %v371, 2
        %v373 = vadd.f32 %v371, %v372
        %v374 = vrot.slane %v373, 1
        %v375 = vadd.f32 %v373, %v374
        %v376 = vlaneseq
        %v377 = vand.u32 %v376, 127
        %vm378 = vcmp.ge.s32.totalorder %v377, 2
        %v379 = vsel %vm378, 1, 0
        %vm380 = vcmp.eq.s32.totalorder %v379, 1
        %v381 = vsel %vm380, %v369, 0.0
        %v382 = vsel %vm380, %v375, 0.0
        %v383 = vld [vmem:[%s4] sm:$0x1]
        %v385 = vperm.slane %v383, 0
        %v387 = vadd.f32 %v344, %v385
        %v388 = vadd.f32 %v346, %v385
        %v389 = vadd.f32 %v387, %v381
        %v390 = vadd.f32 %v388, %v382
        %v391 = vld [vmem:[%s251] sm:$0xf]
        %v392 = vld [vmem:[%s251 + $0x4] sm:$0xf]
        %v393 = vunpack.c.l.bf16 %v391
        %v394 = vunpack.c.l.bf16 %v392
        %v395 = vmax.f32 %v389, 0.0
        %v396 = vmax.f32 %v390, 0.0
        %v397 = vmul.f32 %v389, %v393
        %v398 = vmul.f32 %v390, %v394
        %v399 = vsub.f32 %v395, %v397
        %v400 = vsub.f32 %v396, %v398
        %v401 = vand.u32 2147483647, %v389
        %v402 = vand.u32 2147483647, %v390
        %v403 = vsub.f32 0.0, %v401
        %v404 = vsub.f32 0.0, %v402
        %v405 = vmul.f32 %v403, 1.442695
        %v406 = vpow.pop %v405
        %v407 = vmul.f32 %v404, 1.442695
        %v408 = vpow.pop %v407
        %v409 = vadd.f32 %v406, 1.0
        %v410 = vlog2.pop %v409
        %v411 = vmul.f32 %v410, 0.6931472
        %v412 = vmul.f32 -0.5, %v406
        %v413 = vadd.f32 %v412, 1.0
        %v414 = vmul.f32 %v413, %v406
        %v415 = vand.u32 2147483647, %v406
        %vm416 = vcmp.lt.f32.partialorder %v415, 0.0004427343
        %v417 = vsel %vm416, %v414, %v411
        %v418 = vadd.f32 %v408, 1.0
        %v419 = vlog2.pop %v418
        %v420 = vmul.f32 %v419, 0.6931472
        %v421 = vmul.f32 -0.5, %v408
        %v422 = vadd.f32 %v421, 1.0
        %v423 = vmul.f32 %v422, %v408
        %v424 = vand.u32 2147483647, %v408
        %vm425 = vcmp.lt.f32.partialorder %v424, 0.0004427343
        %v426 = vsel %vm425, %v423, %v420
        %v427 = vadd.f32 %v399, %v417
        %v428 = vadd.f32 %v400, %v426
        %429 = vset.pattern.permute.xlu0 0
        %430 = vperm.xlu0 %429, %v350
        %v431 = vpop.permute.xlu0 %430
        %433 = vset.pattern.permute.xlu0 0
        %434 = vperm.xlu0 %433, %v351
        %v435 = vpop.permute.xlu0 %434
        %v437 = vmul.f32 %v427, %v431
        %v438 = vmul.f32 %v428, %v435
        %v439 = vadd.f32 %v437, %v438
        %v440 = vrot.slane %v439, 4
        %v441 = vadd.f32 %v439, %v440
        %v442 = vrot.slane %v441, 2
        %v443 = vadd.f32 %v441, %v442
        %v444 = vrot.slane %v443, 1
        %v445 = vadd.f32 %v443, %v444
        %vm446 = vcmp.eq.s32.totalorder %v377, 0
        %v447 = vsel %vm446, %v445, 0.0
        %vm448 = vcmask 1040384
        %v449 = vsel %vm448, %v447, 0.0
        %450 = vadd.xlane.f32.xlu0 %v449
        %v451 = vpop.xlane.xlu0 %450
        %v452 = vrot.slane %v451, 4
        %v453 = vadd.f32 %v451, %v452
        %v454 = vrot.slane %v453, 2
        %v455 = vadd.f32 %v453, %v454
        %v456 = vrot.slane %v455, 1
        %v457 = vadd.f32 %v455, %v456
        %s458 = vtos %v457
        %vm459 = vcmp.eq.s32.totalorder %v377, 1
        %v460 = vsel %vm459, %v445, 0.0
        %v461 = vsel %vm448, %v460, 0.0
        %462 = vadd.xlane.f32.xlu0 %v461
        %v463 = vpop.xlane.xlu0 %462
        %v464 = vrot.slane %v463, 4
        %v465 = vadd.f32 %v463, %v464
        %v466 = vrot.slane %v465, 2
        %v467 = vadd.f32 %v465, %v466
        %v468 = vrot.slane %v467, 1
        %v469 = vadd.f32 %v467, %v468
        %s470 = vtos %v469
        %vm471 = vcmp.lt.s32.totalorder %v377, 6
        %vm472 = vmand %vm378, %vm471
        %v473 = vsel %vm472, %v445, 0.0
        %v474 = vsel %vm448, %v473, 0.0
        %475 = vadd.xlane.f32.xlu0 %v474
        %v476 = vpop.xlane.xlu0 %475
        %v477 = vrot.slane %v476, 4
        %v478 = vadd.f32 %v476, %v477
        %v479 = vrot.slane %v478, 2
        %v480 = vadd.f32 %v478, %v479
        %v481 = vrot.slane %v480, 1
        %v482 = vadd.f32 %v480, %v481
        %s483 = vtos %v482
        %vm484 = vcmp.ge.s32.totalorder %v377, 6
        %vm485 = vcmp.lt.s32.totalorder %v377, 10
        %vm486 = vmand %vm484, %vm485
        %v487 = vsel %vm486, %v445, 0.0
        %v488 = vsel %vm448, %v487, 0.0
        %489 = vadd.xlane.f32.xlu0 %v488
        %v490 = vpop.xlane.xlu0 %489
        %v491 = vrot.slane %v490, 4
        %v492 = vadd.f32 %v490, %v491
        %v493 = vrot.slane %v492, 2
        %v494 = vadd.f32 %v492, %v493
        %v495 = vrot.slane %v494, 1
        %v496 = vadd.f32 %v494, %v495
        %s497 = vtos %v496
        %vm498 = vcmask 7168
        %v499 = vsel %vm498, %v350, 0.0
        %v500 = vsel %vm498, %v351, 0.0
        %v501 = vadd.f32 %v499, %v500
        %502 = vadd.xlane.f32.xlu0 %v501
        %v503 = vpop.xlane.xlu0 %502
        %v504 = vrot.slane %v503, 4
        %v505 = vadd.f32 %v503, %v504
        %v506 = vrot.slane %v505, 2
        %v507 = vadd.f32 %v505, %v506
        %v508 = vrot.slane %v507, 1
        %v509 = vadd.f32 %v507, %v508
        %s510 = vtos %v509
        %v511 = vstv %s458
        %v512 = vsel %vm446, %v511, 0.0
        %v513 = vstv %s470
        %v514 = vsel %vm459, %v513, 0.0
        %v515 = vadd.f32 %v512, %v514
        %vm516 = vcmp.eq.s32.totalorder %v377, 2
        %v517 = vstv %s483
        %v518 = vsel %vm516, %v517, 0.0
        %v519 = vadd.f32 %v515, %v518
        %vm520 = vcmp.eq.s32.totalorder %v377, 3
        %v521 = vstv %s497
        %v522 = vsel %vm520, %v521, 0.0
        %v523 = vadd.f32 %v519, %v522
        %vm524 = vcmp.eq.s32.totalorder %v377, 4
        %v525 = vstv %s510
        %v526 = vsel %vm524, %v525, 0.0
        %v527 = vadd.f32 %v523, %v526
        %528 = vst [vmem:[%s292] sm:$0x1] %v527
        %s529 = sand.u32 %s151, 1
        %s530 = scalar_lea.sflag [#allocation4], %s529
        %s531 = sand.u32 %s151, 1
        %s532 = scalar_lea.vmem [#allocation7], %s531
        // Predicated region
        $region49: #{tpu_custom_call.1} parent=39 // pred_check
          %p533 = pneg %p161
        $region50: #{tpu_custom_call.1} parent=39 // pred_check_branch
          %535 = sbr.rel (%p533) target = $region52
        $region51: #{tpu_custom_call.1} parent=39 // pred_region
          %537 = vsyncadd %s530, 0
          %s538 = scalar_lea.hbm %s5, %s23
          %s540 = sshll.u32 %s532, 4
          %s541 = int_to_ptr.vmem [resolvable:$true] %s540
          %s542 = sshll.u32 %s538, 4
          %s543 = int_to_ptr.hbm [resolvable:$true] %s542
          %545 = dma.vmem_to_hbm [thread:$0]  %s541, 16, %s543, %s530
        $region52: #{tpu_custom_call.1} parent=39 // pred_fallthru
          _
      $region40: #{tpu_custom_call.1} parent=5 // pred_fallthru
        _
      %p546 = scmp.le.s32.totalorder 2, %s18
      // Predicated region
      $region53: #{tpu_custom_call.1} parent=5 // pred_check
        %p547 = pneg %p546
      $region54: #{tpu_custom_call.1} parent=5 // pred_check_branch
        %549 = sbr.rel (%p547) target = $region56
      $region55: #{tpu_custom_call.1} parent=5 // pred_region
        %s550 = ssub.s32 %s18, 2
        // Predicated region
        $region57: #{tpu_custom_call.1} parent=55 // pred_check
          %p551 = pneg %p167
        $region58: #{tpu_custom_call.1} parent=55 // pred_check_branch
          %553 = sbr.rel (%p551) target = $region60
        $region59: #{tpu_custom_call.1} parent=55 // pred_region
          %s554 = sand.u32 %s152, 1
          %s555 = scalar_lea.sflag [#allocation4], %s554
          %s556 = sand.u32 %s152, 1
          %s557 = scalar_lea.vmem [#allocation7], %s556
          %559 = dma.done %s555, 16
        $region60: #{tpu_custom_call.1} parent=55 // pred_fallthru
          _
      $region56: #{tpu_custom_call.1} parent=5 // pred_fallthru
        _
    $region6: #{tpu_custom_call.1} parent=1 // loop_footer
      %s22 = sadd.s32 1, %s18
    $region7: #{tpu_custom_call.1} parent=1 // loop_footer_branch
      %17 = sbr.rel target = $region3
    $region8: #{tpu_custom_call.1} parent=1 // loop_exit
      _
    %560 = vsyncpa [#allocation3], 1
    %s561 = scalar_lea.sflag [#allocation3], 1
    %562 = vsyncpa %s561, 1
    %563 = vsyncpa [#allocation6], 1
    %564 = vsyncpa [#allocation4], 1
    %s565 = scalar_lea.sflag [#allocation4], 1
    %566 = vsyncpa %s565, 1

</llo_original>
